<compile_context>
chip_gen: v7x
topology: tpu7x:2x2x1
jax: 0.10.0
libtpu: 0.0.40
codegen_flags: <defaults>
</compile_context>

<pallas_src>
import math
from functools import partial

import jax
import jax.numpy as jnp
from jax import lax
from jax.experimental import pallas as pl
from jax.experimental.pallas import tpu as pltpu

POWER = 50.0
LANES = 128
SUBLANES = 8
# Rows per DMA block: 8192 * 128 * 4 B = 4 MiB per f32 input block.
MAX_BLOCK_ROWS = 8192
# Rows per in-kernel compute chunk (bounds elementwise temporaries to
# ~0.25 MiB per input regardless of DMA block size).
CHUNK_ROWS = 512


def _round_up(x, m):
    return ((x + m - 1) // m) * m


def _cdiv(a, b):
    return (a + b - 1) // b


def _sublane_multiple(dtype):
    # Min second-to-last tile dim: 8 for 4-byte, 16 for 2-byte, 32 for 1-byte.
    return max(SUBLANES, 32 // dtype.itemsize)


def _wmse_kernel(pred_ref, gt_ref, out_ref, *, log_power, block_rows,
                 chunk_rows, blocks_per_split, valid_rows, mask_needed):
    """Accumulate sum((pred-gt)^2 * exp(gt*log_power)) into a resident
    (8, 128) output tile (one per parallel split)."""
    i = pl.program_id(1)  # inner (reduction) grid step

    @pl.when(i == 0)
    def _():
        out_ref[...] = jnp.zeros_like(out_ref)

    if mask_needed:
        block_idx = pl.program_id(0) * blocks_per_split + i
        limit = valid_rows - block_idx * block_rows  # may be <=0 or >block_rows

    num_chunks = block_rows // chunk_rows

    def body(k, acc):
        r0 = pl.multiple_of(k * chunk_rows, chunk_rows)
        p = pred_ref[pl.ds(r0, chunk_rows), :].astype(jnp.float32)
        g = gt_ref[pl.ds(r0, chunk_rows), :].astype(jnp.float32)
        diff = p - g
        # power**gt == exp(gt * log(power)); exp runs on the EUP slot (free
        # filler in this HBM-bound kernel).  NOTE: overflows f32 for
        # gt >~ 22.6; fine for targets in [0, 1) as in the reference usage.
        w = jnp.exp(g * log_power)
        x = diff * diff * w
        if mask_needed:
            row = lax.broadcasted_iota(jnp.int32, (chunk_rows, 1), 0) + r0
            x = jnp.where(row < limit, x, 0.0)
        # Sublane-group reduce: (chunk,128) -> (chunk//8, 8, 128) -> (8,128);
        # pure vreg-wise VPU adds, no cross-lane XLU work per step.
        return acc + jnp.sum(
            x.reshape(chunk_rows // SUBLANES, SUBLANES, LANES), axis=0)

    acc = lax.fori_loop(0, num_chunks, body,
                        jnp.zeros((SUBLANES, LANES), jnp.float32))
    out_ref[...] += acc


def mse_weight_loss(pred, gt, *, power=POWER):
    if pred.shape[1] != gt.shape[1]:
        raise ValueError(f"channel mismatch: pred={pred.shape}, gt={gt.shape}")

    # Stream the caller's native dtype (f32/bf16/f16); widen in-kernel.
    def _norm(x):
        if x.dtype in (jnp.float32, jnp.bfloat16, jnp.float16):
            return x
        return x.astype(jnp.float32)

    pred = _norm(pred)
    gt = _norm(gt)
    n = pred.size

    row_align = max(_sublane_multiple(pred.dtype), _sublane_multiple(gt.dtype))
    pad_elems = row_align * LANES
    padded_n = _round_up(n, pad_elems)

    flat_p = pred.reshape(-1)
    flat_g = gt.reshape(-1)
    if padded_n != n:
        # Cheap pad (< row_align*128 elements) to a sublane-aligned row count.
        # Zero padding contributes exactly 0 to the weighted sum (diff == 0);
        # the mean divides by the true n below.
        flat_p = jnp.pad(flat_p, (0, padded_n - n))
        flat_g = jnp.pad(flat_g, (0, padded_n - n))

    rows = padded_n // LANES
    if rows <= CHUNK_ROWS:
        block_rows = rows
        chunk_rows = rows
    else:
        block_rows = min(MAX_BLOCK_ROWS, _round_up(rows, CHUNK_ROWS))
        chunk_rows = CHUNK_ROWS

    total_blocks = _cdiv(rows, block_rows)
    num_splits = 2 if total_blocks >= 2 else 1      # one split per v7x core
    blocks_per_split = _cdiv(total_blocks, num_splits)
    # Partial edge block, or clamped out-of-range steps of an uneven split?
    mask_needed = (rows % block_rows != 0) or (
        blocks_per_split * num_splits != total_blocks)

    pred2d = flat_p.reshape(rows, LANES)
    gt2d = flat_g.reshape(rows, LANES)

    def in_map(c, i):
        # Clamp so out-of-range steps re-read the last block; their
        # contribution is fully masked in-kernel.
        return (jnp.minimum(c * blocks_per_split + i, total_blocks - 1), 0)

    kernel = partial(
        _wmse_kernel,
        log_power=float(math.log(power)),
        block_rows=block_rows,
        chunk_rows=chunk_rows,
        blocks_per_split=blocks_per_split,
        valid_rows=rows,
        mask_needed=mask_needed,
    )

    in_bytes = pred2d.dtype.itemsize + gt2d.dtype.itemsize
    block_bytes = block_rows * LANES * in_bytes
    # 2 pipeline buffers per input + headroom for chunk temporaries/output.
    vmem_limit = int(min(max(2 * block_bytes + (8 << 20), 16 << 20), 48 << 20))

    partials = pl.pallas_call(
        kernel,
        out_shape=jax.ShapeDtypeStruct((num_splits * SUBLANES, LANES),
                                       jnp.float32),
        grid_spec=pltpu.PrefetchScalarGridSpec(
            num_scalar_prefetch=0,
            grid=(num_splits, blocks_per_split),
            in_specs=[
                pl.BlockSpec((block_rows, LANES), in_map),
                pl.BlockSpec((block_rows, LANES), in_map),
            ],
            out_specs=pl.BlockSpec((SUBLANES, LANES), lambda c, i: (c, 0)),
        ),
        compiler_params=pltpu.CompilerParams(
            dimension_semantics=("parallel", "arbitrary"),
            vmem_limit_bytes=vmem_limit,
        ),
        cost_estimate=pl.CostEstimate(
            flops=6 * n,
            transcendentals=n,
            bytes_accessed=n * in_bytes + num_splits * SUBLANES * LANES * 4,
        ),
    )(pred2d, gt2d)

    # Tiny final reduce (<= 2 * 8 * 128 f32) + mean normalization.
    return jnp.sum(partials) * (1.0 / n)


if __name__ == "__main__":
    key = jax.random.PRNGKey(0)
    kp, kg, kp2, kg2 = jax.random.split(key, 4)

    # Small NCHW case matching the module's typical usage; gt in [0,1)
    # keeps 50**gt finite in f32.
    pred = jax.random.normal(kp, (2, 4, 16, 16), dtype=jnp.float32)
    gt = jax.random.uniform(kg, (2, 4, 16, 16), dtype=jnp.float32)
    loss = mse_weight_loss(pred, gt)
    jax.block_until_ready(loss)
    ref = jnp.mean((pred - gt) ** 2 * jnp.power(50.0, gt))
    assert jnp.allclose(loss, ref, rtol=1e-5, atol=1e-6), (loss, ref)

    # bf16 inputs stream natively (no wrapper upcast); math is f32 in-kernel.
    pred_bf = pred.astype(jnp.bfloat16)
    gt_bf = gt.astype(jnp.bfloat16)
    loss_bf = mse_weight_loss(pred_bf, gt_bf)
    jax.block_until_ready(loss_bf)
    ref_bf = jnp.mean(
        (pred_bf.astype(jnp.float32) - gt_bf.astype(jnp.float32)) ** 2
        * jnp.power(50.0, gt_bf.astype(jnp.float32)))
    assert jnp.allclose(loss_bf, ref_bf, rtol=1e-3, atol=1e-5), (loss_bf, ref_bf)

    # Larger case exercising the 2-TensorCore split + in-kernel tail masking.
    pred_l = jax.random.normal(kp2, (2, 4, 400, 400), dtype=jnp.float32)
    gt_l = jax.random.uniform(kg2, (2, 4, 400, 400), dtype=jnp.float32)
    loss_l = mse_weight_loss(pred_l, gt_l)
    jax.block_until_ready(loss_l)
    ref_l = jnp.mean((pred_l - gt_l) ** 2 * jnp.power(50.0, gt_l))
    assert jnp.allclose(loss_l, ref_l, rtol=2e-4), (loss_l, ref_l)

    print("KERNEL_OK")
</pallas_src>

<mosaic_0001>
module attributes {stable_mosaic.version = 11 : i64} {
  func.func @_wmse_kernel(%arg0: i32, %arg1: i32, %arg2: memref<16x128xf32, #tpu.memory_space<vmem>>, %arg3: memref<16x128xf32, #tpu.memory_space<vmem>>, %arg4: memref<8x128xf32, #tpu.memory_space<vmem>>) attributes {dimension_semantics = [#tpu.dimension_semantics<parallel>, #tpu.dimension_semantics<arbitrary>], iteration_bounds = array<i64: 1, 1>, scalar_prefetch = 0 : i64, scratch_operands = 0 : i64, tpu.core_type = #tpu.core_type<tc>, window_params = [{transform_indices = @transform_0, window_bounds = array<i64: 16, 128>}, {transform_indices = @transform_1, window_bounds = array<i64: 16, 128>}, {transform_indices = @transform_2, window_bounds = array<i64: 8, 128>}]} {
    %c0_i32 = arith.constant 0 : i32
    %0 = arith.cmpi eq, %arg1, %c0_i32 : i32
    %1 = arith.extui %0 : i1 to i32
    %c0_i32_0 = arith.constant 0 : i32
    %2 = arith.cmpi ne, %1, %c0_i32_0 : i32
    scf.if %2 {
      %cst_9 = arith.constant 0.000000e+00 : f32
      %22 = vector.broadcast %cst_9 : f32 to vector<8x128xf32>
      %c0_10 = arith.constant 0 : index
      %c0_11 = arith.constant 0 : index
      %23 = vector.load %arg4[%c0_10, %c0_11] : memref<8x128xf32, #tpu.memory_space<vmem>>, vector<8x128xf32>
      tpu.vector_store %arg4[%c0_10, %c0_11], %22 {strides = array<i32>} : memref<8x128xf32, #tpu.memory_space<vmem>>, vector<8x128xf32>,
    } else {
    }
    %cst = arith.constant 0.000000e+00 : f32
    %3 = vector.broadcast %cst : f32 to vector<8x128xf32>
    %c0_i32_1 = arith.constant 0 : i32
    %c16_i32 = arith.constant 16 : i32
    %4 = arith.muli %c0_i32_1, %c16_i32 : i32
    %5 = tpu.assume_multiple %4, 16 : i32
    %6 = arith.index_cast %5 : i32 to index
    %c0 = arith.constant 0 : index
    %7 = vector.load %arg2[%6, %c0] : memref<16x128xf32, #tpu.memory_space<vmem>>, vector<16x128xf32>
    %8 = arith.index_cast %5 : i32 to index
    %c0_2 = arith.constant 0 : index
    %9 = vector.load %arg3[%8, %c0_2] : memref<16x128xf32, #tpu.memory_space<vmem>>, vector<16x128xf32>
    %10 = arith.subf %7, %9 : vector<16x128xf32>
    %cst_3 = arith.constant 3.91202307 : f32
    %11 = vector.broadcast %cst_3 : f32 to vector<16x128xf32>
    %12 = arith.mulf %9, %11 : vector<16x128xf32>
    %13 = math.exp %12 : vector<16x128xf32>
    %14 = arith.mulf %10, %10 : vector<16x128xf32>
    %15 = arith.mulf %14, %13 : vector<16x128xf32>
    %16 = vector.shape_cast %15 : vector<16x128xf32> to vector<2x8x128xf32>
    %cst_4 = arith.constant dense<0.000000e+00> : vector<8x128xf32>
    %17 = vector.multi_reduction <add>, %16, %cst_4 [0] : vector<2x8x128xf32> to vector<8x128xf32>
    %18 = arith.addf %3, %17 : vector<8x128xf32>
    %c1_i32 = arith.constant 1 : i32
    %c0_5 = arith.constant 0 : index
    %c0_6 = arith.constant 0 : index
    %19 = vector.load %arg4[%c0_5, %c0_6] : memref<8x128xf32, #tpu.memory_space<vmem>>, vector<8x128xf32>
    %20 = arith.addf %19, %18 : vector<8x128xf32>
    %c0_7 = arith.constant 0 : index
    %c0_8 = arith.constant 0 : index
    %21 = vector.load %arg4[%c0_7, %c0_8] : memref<8x128xf32, #tpu.memory_space<vmem>>, vector<8x128xf32>
    tpu.vector_store %arg4[%c0_7, %c0_8], %20 {strides = array<i32>} : memref<8x128xf32, #tpu.memory_space<vmem>>, vector<8x128xf32>,
    return
  }
  func.func @transform_0(%arg0: i32, %arg1: i32) -> (i32, i32) {
    %c1_i32 = arith.constant 1 : i32
    %0 = arith.muli %arg0, %c1_i32 : i32
    %1 = arith.addi %0, %arg1 : i32
    %c0_i32 = arith.constant 0 : i32
    %2 = arith.minsi %1, %c0_i32 : i32
    %c0_i32_0 = arith.constant 0 : i32
    %c0_i32_1 = arith.constant 0 : i32
    return %2, %c0_i32_0 : i32, i32
  }
  func.func @transform_1(%arg0: i32, %arg1: i32) -> (i32, i32) {
    %c1_i32 = arith.constant 1 : i32
    %0 = arith.muli %arg0, %c1_i32 : i32
    %1 = arith.addi %0, %arg1 : i32
    %c0_i32 = arith.constant 0 : i32
    %2 = arith.minsi %1, %c0_i32 : i32
    %c0_i32_0 = arith.constant 0 : i32
    %c0_i32_1 = arith.constant 0 : i32
    return %2, %c0_i32_0 : i32, i32
  }
  func.func @transform_2(%arg0: i32, %arg1: i32) -> (i32, i32) {
    %c0_i32 = arith.constant 0 : i32
    %c0_i32_0 = arith.constant 0 : i32
    return %arg0, %c0_i32 : i32, i32
  }
}

</mosaic_0001>

<llo_original>
// kernel: tpu_custom_call.1
$region0: #{tpu_custom_call.1}
  #allocation0 [shape = 'u32[]', space=smem, size = 0x4, offset = 0x4, fixed_abs, tag = 'smem constant byte address 0x4 - core index']
  #allocation1 [shape = 'u32[144,128]{1,0:T(1,128)}', space=vmem, size = 0x12000, scoped, tag = 'internal scratch']
  %s0 = inlined_call_operand.hbm [shape: f32[16,128], index: 0, kind: input, shape index: {}]
  %s1 = inlined_call_operand.hbm [shape: f32[16,128], index: 1, kind: input, shape index: {}]
  %s2 = inlined_call_operand.hbm [shape: f32[8,128], index: 2, kind: output, shape index: {}]
  %s3 = sld [smem:[#allocation0]]
  $region30: #{tpu_custom_call.1} parent=0
    _
  %s5 = ssub.s32 1, %s3
  %s6 = scalar_select 0, %s5, %s3
  $region1: #{tpu_custom_call.1} parent=0
    #allocation2 [shape = 'u8[8192]{0}', space=vmem, size = 0x2000, scoped, tag = 'input window, operand 0, single buffered']
    #allocation3 [shape = 's32[1]{0}', space=sflag, size = 0x4, scoped, tag = 'scoped memory for tpu_custom_call.1']
    #allocation4 [shape = 's32[1]{0}', space=sflag, size = 0x4, scoped, tag = 'scoped memory for tpu_custom_call.1']
    #allocation5 [shape = 'u8[8192]{0}', space=vmem, size = 0x2000, scoped, tag = 'input window, operand 1, single buffered']
    #allocation6 [shape = 's32[1]{0}', space=sflag, size = 0x4, scoped, tag = 'scoped memory for tpu_custom_call.1']
    #allocation7 [shape = 'u8[4096]{0}', space=vmem, size = 0x1000, scoped, tag = 'output window, operand 0, single buffered']
    %7 = vsyncpa [#allocation3], 0
    %8 = vsyncpa [#allocation6], 0
    %9 = vsyncpa [#allocation4], 0
    // Predicated region
    $region2: #{tpu_custom_call.1} parent=1 // pred_check
      _
    $region3: #{tpu_custom_call.1} parent=1 // pred_check_branch
      %11 = sbr.rel (0) target = $region5
    $region4: #{tpu_custom_call.1} parent=1 // pred_region
      %s12 = sadd.s32 0, 0
      %p13 = scmp.lt.s32.totalorder %s12, 0
      %s14 = scalar_select %p13, %s12, 0
      %s15 = smul.u32 2, %s14
      %s17 = ssub.s32 256, 256
      %18 = vsyncadd [#allocation3], %s17
      %s19 = smul.addr %s15, 128
      %s20 = scalar_lea.hbm %s0, %s19
      %s21 = sshll.u32 [#allocation2], 4
      %s22 = int_to_ptr.vmem [resolvable:$true] %s21
      %27 = dma.hbm_to_vmem [thread:$0]  %s20, 256, %s22, [#allocation3], 128, 128, 8
    $region5: #{tpu_custom_call.1} parent=1 // pred_fallthru
      _
    // Predicated region
    $region6: #{tpu_custom_call.1} parent=1 // pred_check
      _
    $region7: #{tpu_custom_call.1} parent=1 // pred_check_branch
      %29 = sbr.rel (0) target = $region9
    $region8: #{tpu_custom_call.1} parent=1 // pred_region
      %s30 = sadd.s32 0, 0
      %p31 = scmp.lt.s32.totalorder %s30, 0
      %s32 = scalar_select %p31, %s30, 0
      %s33 = smul.u32 2, %s32
      %s35 = ssub.s32 256, 256
      %36 = vsyncadd [#allocation6], %s35
      %s37 = smul.addr %s33, 128
      %s38 = scalar_lea.hbm %s1, %s37
      %s39 = sshll.u32 [#allocation5], 4
      %s40 = int_to_ptr.vmem [resolvable:$true] %s39
      %45 = dma.hbm_to_vmem [thread:$0]  %s38, 256, %s40, [#allocation6], 128, 128, 8
    $region9: #{tpu_custom_call.1} parent=1 // pred_fallthru
      _
    // Predicated region
    $region10: #{tpu_custom_call.1} parent=1 // pred_check
      _
    $region11: #{tpu_custom_call.1} parent=1 // pred_check_branch
      %47 = sbr.rel (0) target = $region13
    $region12: #{tpu_custom_call.1} parent=1 // pred_region
      %48 = dma.done [#allocation3], 256
    $region13: #{tpu_custom_call.1} parent=1 // pred_fallthru
      _
    // Predicated region
    $region14: #{tpu_custom_call.1} parent=1 // pred_check
      _
    $region15: #{tpu_custom_call.1} parent=1 // pred_check_branch
      %50 = sbr.rel (0) target = $region17
    $region16: #{tpu_custom_call.1} parent=1 // pred_region
      %51 = dma.done [#allocation6], 256
    $region17: #{tpu_custom_call.1} parent=1 // pred_fallthru
      _
    %s52 = sadd.s32 0, 0
    %p53 = scmp.lt.s32.totalorder %s52, 0
    %s54 = scalar_select %p53, %s52, 0
    %s55 = smul.u32 2, %s54
    %s56 = sadd.s32 0, 0
    %p57 = scmp.lt.s32.totalorder %s56, 0
    %s58 = scalar_select %p57, %s56, 0
    %s59 = smul.u32 2, %s58
    %p60 = scmp.eq.s32.totalorder 0, 0
    // Predicated region
    $region18: #{tpu_custom_call.1} parent=1 // pred_check
      %p61 = pneg %p60
    $region19: #{tpu_custom_call.1} parent=1 // pred_check_branch
      %63 = sbr.rel (%p61) target = $region21
    $region20: #{tpu_custom_call.1} parent=1 // pred_region
      %64 = vst [vmem:[#allocation7] sm:$0xff] 0.0
    $region21: #{tpu_custom_call.1} parent=1 // pred_fallthru
      _
    %v65 = vld [vmem:[#allocation2] sm:$0xff]
    %v66 = vld [vmem:[#allocation2 + $0x8] sm:$0xff]
    %v67 = vld [vmem:[#allocation5] sm:$0xff]
    %v68 = vld [vmem:[#allocation5 + $0x8] sm:$0xff]
    %v69 = vsub.f32 %v65, %v67
    %v70 = vsub.f32 %v66, %v68
    %v71 = vmul.f32 %v67, 3.912023
    %v72 = vmul.f32 %v68, 3.912023
    %v73 = vmul.f32 %v71, 1.442695
    %v74 = vpow.pop %v73
    %v75 = vmul.f32 %v72, 1.442695
    %v76 = vpow.pop %v75
    %v77 = vmul.f32 %v69, %v69
    %v78 = vmul.f32 %v70, %v70
    %v79 = vmul.f32 %v77, %v74
    %v80 = vmul.f32 %v78, %v76
    %v81 = vadd.f32 %v79, %v80
    %v82 = vadd.f32 %v81, 0.0
    %v83 = vld [vmem:[#allocation7] sm:$0xff]
    %v84 = vadd.f32 %v83, %v82
    %85 = vst [vmem:[#allocation7] sm:$0xff] %v84
    // Predicated region
    $region22: #{tpu_custom_call.1} parent=1 // pred_check
      _
    $region23: #{tpu_custom_call.1} parent=1 // pred_check_branch
      %87 = sbr.rel (0) target = $region25
    $region24: #{tpu_custom_call.1} parent=1 // pred_region
      %s89 = ssub.s32 128, 128
      %90 = vsyncadd [#allocation4], %s89
      %s92 = sshll.u32 [#allocation7], 4
      %s93 = int_to_ptr.vmem [resolvable:$true] %s92
      %95 = dma.vmem_to_hbm [thread:$0]  %s93, 128, %s2, [#allocation4]
    $region25: #{tpu_custom_call.1} parent=1 // pred_fallthru
      _
    // Predicated region
    $region26: #{tpu_custom_call.1} parent=1 // pred_check
      _
    $region27: #{tpu_custom_call.1} parent=1 // pred_check_branch
      %97 = sbr.rel (0) target = $region29
    $region28: #{tpu_custom_call.1} parent=1 // pred_region
      %98 = dma.done [#allocation4], 128
    $region29: #{tpu_custom_call.1} parent=1 // pred_fallthru
      _
    %99 = vsyncpa [#allocation3], 1
    %100 = vsyncpa [#allocation6], 1
    %101 = vsyncpa [#allocation4], 1

</llo_original>
